<compile_context>
chip_gen: v7x
topology: tpu7x:2x2x1
jax: 0.10.0
libtpu: 0.0.40
codegen_flags: <defaults>
</compile_context>

<pallas_src>
import functools
import math

import jax
import jax.numpy as jnp
from jax import lax
from jax.experimental import pallas as pl
from jax.experimental.pallas import tpu as pltpu

_LANE = 128
_SUBLANE = 8
_VMEM_LIMIT_BYTES = 32 * 1024 * 1024   # <= scoped/physical limits on v5e/v6e/v7x
_TILE_VMEM_BUDGET = 8 * 1024 * 1024    # keep live blocks well under the v5e 16 MiB default


def _round_up(x, m):
    return ((x + m - 1) // m) * m


def _gelu_exact(x):
    # PyTorch default GELU: 0.5 * x * (1 + erf(x / sqrt(2)))
    return 0.5 * x * (1.0 + lax.erf(x * jnp.float32(1.0 / math.sqrt(2.0))))


# -----------------------------------------------------------------------------
# Layer 0 kernel: 1-channel conv as VPU tap FMAs + cross-tile GroupNorm stats.
# -----------------------------------------------------------------------------
def _conv0_stats_kernel(p_ref, w_ref, y_ref, stats_ref, *, k, t_tile, t_valid):
    ti = pl.program_id(1)
    p = p_ref[0].astype(jnp.float32)          # (t_tile, k)   k = 3..10 taps
    w = w_ref[...].astype(jnp.float32)        # (k, C_pad)
    c = w.shape[1]

    # C_in * K is tiny -> keep it off the MXU: K VPU FMAs over (t_tile, C_pad).
    y = jnp.zeros((t_tile, c), jnp.float32)
    for j in range(k):
        y = y + p[:, j:j + 1] * w[j:j + 1, :]
    y_ref[0] = y.astype(y_ref.dtype)          # raw conv output (GN+GELU deferred)

    # Per-(batch, channel) sum / sum-of-squares over *valid* frames only.
    row = ti * t_tile + lax.broadcasted_iota(jnp.int32, (t_tile, 1), 0)
    ym = jnp.where(row < t_valid, y, 0.0)
    s1 = jnp.sum(ym, axis=0, keepdims=True)
    s2 = jnp.sum(ym * ym, axis=0, keepdims=True)
    upd = jnp.concatenate([s1, s2, jnp.zeros((6, c), jnp.float32)], axis=0)  # (8, C)

    @pl.when(ti == 0)
    def _init():
        stats_ref[...] = jnp.zeros_like(stats_ref)

    stats_ref[0] += upd


# -----------------------------------------------------------------------------
# Generic conv block kernel (layers >= 1): optional fused pre-activation
# (deferred GroupNorm scale/shift + GELU from layer 0), K shifted matmuls, GELU.
# -----------------------------------------------------------------------------
def _conv_block_kernel(*refs, k, stride, t_tile, halo, pre_act, mxu_dtype):
    if pre_act:
        xm_ref, xh_ref, scale_ref, shift_ref, w_ref, o_ref, xbuf = refs
    else:
        xm_ref, xh_ref, w_ref, o_ref, xbuf = refs
        scale_ref = shift_ref = None

    t_main = t_tile * stride
    vm = xm_ref[0].astype(jnp.float32)        # (t_main, C_in)  main input window
    vh = xh_ref[0].astype(jnp.float32)        # (halo,  C_in)  halo rows
    if pre_act:
        sc = scale_ref[0]                     # (1, C_in)
        sh = shift_ref[0]
        vm = _gelu_exact(vm * sc + sh)
        vh = _gelu_exact(vh * sc + sh)

    # Assemble the overlapping window in VMEM (no HBM im2col / patches array).
    xbuf[0:t_main, :] = vm
    xbuf[t_main:t_main + halo, :] = vh

    c_out = o_ref.shape[-1]
    acc = jnp.zeros((t_tile, c_out), jnp.float32)
    for j in range(k):
        if stride > 1:
            rows = pl.ds(j, t_tile, stride=stride)
        else:
            rows = pl.ds(j, t_tile)
        xj = xbuf[rows, :].astype(mxu_dtype)          # (t_tile, C_in)
        acc += jnp.dot(xj, w_ref[j], preferred_element_type=jnp.float32)

    o_ref[0] = _gelu_exact(acc).astype(o_ref.dtype)


# -----------------------------------------------------------------------------
# Finalize kernel (only used when the model has a single conv layer).
# -----------------------------------------------------------------------------
def _gn_gelu_kernel(x_ref, scale_ref, shift_ref, o_ref):
    y = x_ref[0].astype(jnp.float32) * scale_ref[0] + shift_ref[0]
    o_ref[0] = _gelu_exact(y).astype(o_ref.dtype)


# -----------------------------------------------------------------------------
# pallas_call wrappers
# -----------------------------------------------------------------------------
def _pick_time_tile(c_in_row, c_out_pad, stride, granule, t_valid, max_time_tile):
    # Bytes per output-time row: double-buffered input + output blocks + f32 window.
    row_bytes = 4 * (2 * stride * c_in_row + 2 * c_out_pad + stride * c_in_row)
    t = _TILE_VMEM_BUDGET // row_bytes
    t = min(t, max_time_tile, _round_up(t_valid, granule))
    t = max(granule, (t // granule) * granule)
    return int(t)


def _layer0_call(series, weight, *, k, s, c_pad, t_tile, T_alloc, T_valid0,
                 storage_dtype):
    B, T = series.shape
    C_out = weight.shape[0]
    # Patches are built only for the 1-channel raw audio (tiny vs. activations).
    T_need = (T_alloc - 1) * s + k
    xpad = jnp.pad(series, ((0, 0), (0, max(0, T_need - T))))
    idx = jnp.arange(T_alloc)[:, None] * s + jnp.arange(k)[None, :]
    patches = xpad[:, idx].astype(storage_dtype)              # (B, T_alloc, k)
    w0 = jnp.transpose(weight[:, 0, :], (1, 0))               # (k, C_out)
    w0 = jnp.pad(w0, ((0, 0), (0, c_pad - C_out))).astype(jnp.float32)

    nT = T_alloc // t_tile
    kernel = functools.partial(_conv0_stats_kernel, k=k, t_tile=t_tile,
                               t_valid=T_valid0)
    y, stats = pl.pallas_call(
        kernel,
        out_shape=(jax.ShapeDtypeStruct((B, T_alloc, c_pad), storage_dtype),
                   jax.ShapeDtypeStruct((B, 8, c_pad), jnp.float32)),
        grid=(B, nT),
        in_specs=[pl.BlockSpec((1, t_tile, k), lambda b, t: (b, t, 0)),
                  pl.BlockSpec((k, c_pad), lambda b, t: (0, 0))],
        out_specs=(pl.BlockSpec((1, t_tile, c_pad), lambda b, t: (b, t, 0)),
                   pl.BlockSpec((1, 8, c_pad), lambda b, t: (b, 0, 0))),
        compiler_params=pltpu.CompilerParams(
            dimension_semantics=("parallel", "arbitrary"),
            vmem_limit_bytes=_VMEM_LIMIT_BYTES),
    )(patches, w0)
    return y, stats


def _conv_layer_call(x, weight, *, k, s, c_out_pad, t_tile, halo, T_alloc_out,
                     pre, mxu_dtype, storage_dtype):
    B, T_in_alloc, c_in_pad = x.shape
    C_out, C_in, _ = weight.shape
    t_main = t_tile * s
    nT = T_alloc_out // t_tile
    assert t_main % halo == 0
    assert T_in_alloc >= nT * t_main + halo

    # (C_out, C_in, K) -> (K, C_in_pad, C_out_pad), cast once for the MXU.
    wt = jnp.transpose(weight, (2, 1, 0))
    wt = jnp.pad(wt, ((0, 0), (0, c_in_pad - C_in), (0, c_out_pad - C_out)))
    wt = wt.astype(mxu_dtype)

    pre_act = pre is not None
    kernel = functools.partial(_conv_block_kernel, k=k, stride=s, t_tile=t_tile,
                               halo=halo, pre_act=pre_act, mxu_dtype=mxu_dtype)

    in_specs = [
        # Main window + halo of the same activation array: both auto-pipelined.
        pl.BlockSpec((1, t_main, c_in_pad), lambda b, t: (b, t, 0)),
        pl.BlockSpec((1, halo, c_in_pad),
                     lambda b, t: (b, (t + 1) * (t_main // halo), 0)),
    ]
    args = [x, x]
    if pre_act:
        in_specs += [pl.BlockSpec((1, 1, c_in_pad), lambda b, t: (b, 0, 0)),
                     pl.BlockSpec((1, 1, c_in_pad), lambda b, t: (b, 0, 0))]
        args += [pre[0], pre[1]]
    in_specs.append(pl.BlockSpec((k, c_in_pad, c_out_pad), lambda b, t: (0, 0, 0)))
    args.append(wt)

    return pl.pallas_call(
        kernel,
        out_shape=jax.ShapeDtypeStruct((B, T_alloc_out, c_out_pad), storage_dtype),
        grid=(B, nT),
        in_specs=in_specs,
        out_specs=pl.BlockSpec((1, t_tile, c_out_pad), lambda b, t: (b, t, 0)),
        scratch_shapes=[pltpu.VMEM((t_main + halo, c_in_pad), jnp.float32)],
        compiler_params=pltpu.CompilerParams(
            dimension_semantics=("parallel", "parallel"),
            vmem_limit_bytes=_VMEM_LIMIT_BYTES),
    )(*args)


def _gn_gelu_call(y, scale, shift, *, t_tile, storage_dtype):
    B, T_alloc, c_pad = y.shape
    nT = T_alloc // t_tile
    return pl.pallas_call(
        _gn_gelu_kernel,
        out_shape=jax.ShapeDtypeStruct((B, T_alloc, c_pad), storage_dtype),
        grid=(B, nT),
        in_specs=[pl.BlockSpec((1, t_tile, c_pad), lambda b, t: (b, t, 0)),
                  pl.BlockSpec((1, 1, c_pad), lambda b, t: (b, 0, 0)),
                  pl.BlockSpec((1, 1, c_pad), lambda b, t: (b, 0, 0))],
        out_specs=pl.BlockSpec((1, t_tile, c_pad), lambda b, t: (b, t, 0)),
        compiler_params=pltpu.CompilerParams(
            dimension_semantics=("parallel", "parallel"),
            vmem_limit_bytes=_VMEM_LIMIT_BYTES),
    )(y, scale, shift)


# -----------------------------------------------------------------------------
# Full module forward.
# -----------------------------------------------------------------------------
def conv_feature_extraction_forward(series, params, conv_layers, *,
                                    mxu_dtype=jnp.bfloat16, max_time_tile=512):
    """series: (B, T) -> (B, Feat, Frame). params: list of per-layer dicts."""
    assert len(conv_layers) >= 1
    storage_dtype = series.dtype
    B, T = series.shape
    L = len(conv_layers)
    dims = [c[0] for c in conv_layers]
    ks = [c[1] for c in conv_layers]
    ss = [c[2] for c in conv_layers]
    c_pads = [_round_up(d, _LANE) for d in dims]

    # Valid (un-padded) frame counts per layer.
    T_valid = []
    t = T
    for (d, k, s) in conv_layers:
        t = (t - k) // s + 1
        assert t > 0, "input too short for the conv stack"
        T_valid.append(t)

    # Per-layer halo (extra input rows past the main block) and time tiles.
    halos = [0] * L
    t_tiles = [0] * L
    for i in range(L):
        k, s = ks[i], ss[i]
        halos[i] = _round_up(max(k - s, 1), _SUBLANE)
        granule = _SUBLANE if i == 0 else halos[i]   # ensures (t_tile*s) % halo == 0
        c_in_row = ks[0] if i == 0 else c_pads[i - 1]
        t_tiles[i] = _pick_time_tile(c_in_row, c_pads[i], s, granule,
                                     T_valid[i], max_time_tile)

    # Time allocation per layer output: multiple of its tile and large enough that
    # the next layer's main + halo block reads never go out of bounds.
    T_alloc = [0] * L
    T_alloc[L - 1] = _round_up(T_valid[L - 1], t_tiles[L - 1])
    for i in range(L - 2, -1, -1):
        nT_next = T_alloc[i + 1] // t_tiles[i + 1]
        need = nT_next * t_tiles[i + 1] * ss[i + 1] + halos[i + 1]
        T_alloc[i] = _round_up(max(need, T_valid[i]), t_tiles[i])

    # ---- Layer 0: conv (VPU taps) + cross-tile GroupNorm statistics ----
    y, stats = _layer0_call(series, params[0]["weight"], k=ks[0], s=ss[0],
                            c_pad=c_pads[0], t_tile=t_tiles[0],
                            T_alloc=T_alloc[0], T_valid0=T_valid[0],
                            storage_dtype=storage_dtype)

    # Fold GroupNorm(C, C) + affine into per-(batch, channel) scale/shift (tiny glue).
    cnt = jnp.float32(T_valid[0])
    mean = stats[:, 0, :] / cnt
    var = jnp.maximum(stats[:, 1, :] / cnt - mean * mean, 0.0)
    gamma = jnp.pad(params[0]["gamma"].astype(jnp.float32), (0, c_pads[0] - dims[0]))
    beta = jnp.pad(params[0]["beta"].astype(jnp.float32), (0, c_pads[0] - dims[0]))
    scale2 = gamma[None, :] * lax.rsqrt(var + 1e-5)            # (B, C)
    shift2 = beta[None, :] - mean * scale2
    scale = scale2[:, None, :]                                 # (B, 1, C)
    shift = shift2[:, None, :]

    if L == 1:
        y = _gn_gelu_call(y, scale, shift, t_tile=t_tiles[0],
                          storage_dtype=storage_dtype)
    else:
        for i in range(1, L):
            pre = (scale, shift) if i == 1 else None   # layer 1 applies layer 0's GN+GELU
            y = _conv_layer_call(y, params[i]["weight"], k=ks[i], s=ss[i],
                                 c_out_pad=c_pads[i], t_tile=t_tiles[i],
                                 halo=halos[i], T_alloc_out=T_alloc[i],
                                 pre=pre, mxu_dtype=mxu_dtype,
                                 storage_dtype=storage_dtype)

    # Strip padding, single layout change back to PyTorch's (B, Feat, Frame).
    # TODO(synk): fusing pairs of identical 512-ch layers into one pallas_call would
    # remove one full activation HBM round trip per fused boundary.
    y = y[:, :T_valid[-1], :dims[-1]]
    return jnp.transpose(y, (0, 2, 1))


# -----------------------------------------------------------------------------
# Pure-JAX reference for validation.
# -----------------------------------------------------------------------------
def _reference_forward(series, params, conv_layers):
    x = series[:, None, :]
    for i, (dim, k, stride) in enumerate(conv_layers):
        p = params[i]
        y = lax.conv_general_dilated(
            x, p["weight"], window_strides=(stride,), padding="VALID",
            dimension_numbers=("NCH", "OIH", "NCH"))
        if i == 0:
            mean = jnp.mean(y, axis=-1, keepdims=True)
            var = jnp.mean((y - mean) ** 2, axis=-1, keepdims=True)
            y = (y - mean) * lax.rsqrt(var + 1e-5)
            y = y * p["gamma"][None, :, None] + p["beta"][None, :, None]
        x = jax.nn.gelu(y, approximate=False)
    return x


# -----------------------------------------------------------------------------
# Main
# -----------------------------------------------------------------------------
if __name__ == "__main__":
    conv_layers = [(32, 3, 2), (32, 2, 2)]
    B, T = 2, 64

    key = jax.random.PRNGKey(0)
    k_x, k_w0, k_w1, k_g, k_b = jax.random.split(key, 5)
    series = jax.random.normal(k_x, (B, T), dtype=jnp.float32)

    params = []
    in_d = 1
    wkeys = [k_w0, k_w1]
    for i, (dim, k, stride) in enumerate(conv_layers):
        w = jax.random.normal(wkeys[i], (dim, in_d, k), dtype=jnp.float32) * 0.1
        layer = {"weight": w}
        if i == 0:
            layer["gamma"] = 1.0 + 0.05 * jax.random.normal(k_g, (dim,), jnp.float32)
            layer["beta"] = 0.05 * jax.random.normal(k_b, (dim,), jnp.float32)
        params.append(layer)
        in_d = dim

    ref = jax.block_until_ready(_reference_forward(series, params, conv_layers))

    # f32 MXU path with small time tiles: exercises the multi-tile time grid,
    # halo reads and the cross-tile GroupNorm reduction.
    out32 = jax.block_until_ready(conv_feature_extraction_forward(
        series, params, conv_layers, mxu_dtype=jnp.float32, max_time_tile=8))
    assert out32.shape == ref.shape, (out32.shape, ref.shape)
    assert jnp.allclose(out32, ref, rtol=5e-3, atol=5e-3), \
        float(jnp.max(jnp.abs(out32 - ref)))

    # bf16 MXU-operand path (default for v6e/v7x), different tile size.
    out16 = jax.block_until_ready(conv_feature_extraction_forward(
        series, params, conv_layers, mxu_dtype=jnp.bfloat16, max_time_tile=16))
    assert out16.shape == ref.shape, (out16.shape, ref.shape)
    assert jnp.allclose(out16, ref, rtol=5e-2, atol=5e-2), \
        float(jnp.max(jnp.abs(out16 - ref)))

    print("KERNEL_OK")
</pallas_src>

<mosaic_0001>
module attributes {stable_mosaic.version = 11 : i64} {
  func.func @_conv0_stats_kernel(%arg0: i32, %arg1: i32, %arg2: memref<1x8x3xf32, #tpu.memory_space<vmem>>, %arg3: memref<3x128xf32, #tpu.memory_space<vmem>>, %arg4: memref<1x8x128xf32, #tpu.memory_space<vmem>>, %arg5: memref<1x8x128xf32, #tpu.memory_space<vmem>>) attributes {dimension_semantics = [#tpu.dimension_semantics<parallel>, #tpu.dimension_semantics<arbitrary>], iteration_bounds = array<i64: 2, 5>, scalar_prefetch = 0 : i64, scratch_operands = 0 : i64, tpu.core_type = #tpu.core_type<tc>, window_params = [{transform_indices = @transform_0, window_bounds = array<i64: 1, 8, 3>}, {pipeline_mode = #tpu.pipeline_mode<synchronous>, transform_indices = @transform_1, window_bounds = array<i64: 3, 128>}, {transform_indices = @transform_2, window_bounds = array<i64: 1, 8, 128>}, {transform_indices = @transform_3, window_bounds = array<i64: 1, 8, 128>}]} {
    %c0 = arith.constant 0 : index
    %c0_0 = arith.constant 0 : index
    %c0_1 = arith.constant 0 : index
    %0 = vector.load %arg2[%c0, %c0_0, %c0_1] : memref<1x8x3xf32, #tpu.memory_space<vmem>>, vector<1x8x3xf32>
    %1 = vector.shape_cast %0 : vector<1x8x3xf32> to vector<8x3xf32>
    %c0_2 = arith.constant 0 : index
    %c0_3 = arith.constant 0 : index
    %2 = vector.load %arg3[%c0_2, %c0_3] : memref<3x128xf32, #tpu.memory_space<vmem>>, vector<3x128xf32>
    %cst = arith.constant 0.000000e+00 : f32
    %3 = vector.broadcast %cst : f32 to vector<8x128xf32>
    %4 = vector.extract_strided_slice %1 {offsets = [0, 0], sizes = [8, 1], strides = [1, 1]} : vector<8x3xf32> to vector<8x1xf32>
    %5 = vector.extract_strided_slice %2 {offsets = [0, 0], sizes = [1, 128], strides = [1, 1]} : vector<3x128xf32> to vector<1x128xf32>
    %6 = vector.broadcast %4 : vector<8x1xf32> to vector<8x128xf32>
    %7 = vector.broadcast %5 : vector<1x128xf32> to vector<8x128xf32>
    %8 = arith.mulf %6, %7 : vector<8x128xf32>
    %9 = arith.addf %3, %8 : vector<8x128xf32>
    %10 = vector.extract_strided_slice %1 {offsets = [0, 1], sizes = [8, 1], strides = [1, 1]} : vector<8x3xf32> to vector<8x1xf32>
    %11 = vector.extract_strided_slice %2 {offsets = [1, 0], sizes = [1, 128], strides = [1, 1]} : vector<3x128xf32> to vector<1x128xf32>
    %12 = vector.broadcast %10 : vector<8x1xf32> to vector<8x128xf32>
    %13 = vector.broadcast %11 : vector<1x128xf32> to vector<8x128xf32>
    %14 = arith.mulf %12, %13 : vector<8x128xf32>
    %15 = arith.addf %9, %14 : vector<8x128xf32>
    %16 = vector.extract_strided_slice %1 {offsets = [0, 2], sizes = [8, 1], strides = [1, 1]} : vector<8x3xf32> to vector<8x1xf32>
    %17 = vector.extract_strided_slice %2 {offsets = [2, 0], sizes = [1, 128], strides = [1, 1]} : vector<3x128xf32> to vector<1x128xf32>
    %18 = vector.broadcast %16 : vector<8x1xf32> to vector<8x128xf32>
    %19 = vector.broadcast %17 : vector<1x128xf32> to vector<8x128xf32>
    %20 = arith.mulf %18, %19 : vector<8x128xf32>
    %21 = arith.addf %15, %20 : vector<8x128xf32>
    %c0_4 = arith.constant 0 : index
    %c0_5 = arith.constant 0 : index
    %c0_6 = arith.constant 0 : index
    %22 = vector.load %arg4[%c0_4, %c0_5, %c0_6] : memref<1x8x128xf32, #tpu.memory_space<vmem>>, vector<1x8x128xf32>
    %23 = vector.shape_cast %22 : vector<1x8x128xf32> to vector<8x128xf32>
    %24 = vector.shape_cast %21 : vector<8x128xf32> to vector<1x8x128xf32>
    tpu.vector_store %arg4[%c0_4, %c0_5, %c0_6], %24 {strides = array<i32>} : memref<1x8x128xf32, #tpu.memory_space<vmem>>, vector<1x8x128xf32>,
    %c8_i32 = arith.constant 8 : i32
    %25 = arith.muli %arg1, %c8_i32 : i32
    %26 = tpu.iota {dimensions = array<i32: 0>} : vector<8x1xi32>
    %27 = vector.broadcast %25 : i32 to vector<8x1xi32>
    %28 = arith.addi %27, %26 : vector<8x1xi32>
    %c31_i32 = arith.constant 31 : i32
    %29 = vector.broadcast %c31_i32 : i32 to vector<8x1xi32>
    %30 = arith.cmpi slt, %28, %29 : vector<8x1xi32>
    %cst_7 = arith.constant 0.000000e+00 : f32
    %31 = vector.shape_cast %30 : vector<8x1xi1> to vector<8x1xi1>
    %32 = vector.broadcast %31 : vector<8x1xi1> to vector<8x128xi1>
    %33 = vector.broadcast %cst_7 : f32 to vector<8x128xf32>
    %34 = arith.select %32, %21, %33 : vector<8x128xi1>, vector<8x128xf32>
    %cst_8 = arith.constant dense<0.000000e+00> : vector<128xf32>
    %35 = vector.multi_reduction <add>, %34, %cst_8 [0] : vector<8x128xf32> to vector<128xf32>
    %36 = vector.shape_cast %35 : vector<128xf32> to vector<1x128xf32>
    %37 = arith.mulf %34, %34 : vector<8x128xf32>
    %cst_9 = arith.constant dense<0.000000e+00> : vector<128xf32>
    %38 = vector.multi_reduction <add>, %37, %cst_9 [0] : vector<8x128xf32> to vector<128xf32>
    %39 = vector.shape_cast %38 : vector<128xf32> to vector<1x128xf32>
    %cst_10 = arith.constant 0.000000e+00 : f32
    %40 = vector.broadcast %cst_10 : f32 to vector<6x128xf32>
    %41 = tpu.concatenate %36, %39, %40 in 0 : vector<1x128xf32>, vector<1x128xf32>, vector<6x128xf32> -> vector<8x128xf32>
    %c0_i32 = arith.constant 0 : i32
    %42 = arith.cmpi eq, %arg1, %c0_i32 : i32
    %43 = arith.extui %42 : i1 to i32
    %c0_i32_11 = arith.constant 0 : i32
    %44 = arith.cmpi ne, %43, %c0_i32_11 : i32
    scf.if %44 {
      %cst_18 = arith.constant 0.000000e+00 : f32
      %51 = vector.broadcast %cst_18 : f32 to vector<1x8x128xf32>
      %c0_19 = arith.constant 0 : index
      %c0_20 = arith.constant 0 : index
      %c0_21 = arith.constant 0 : index
      %52 = vector.load %arg5[%c0_19, %c0_20, %c0_21] : memref<1x8x128xf32, #tpu.memory_space<vmem>>, vector<1x8x128xf32>
      tpu.vector_store %arg5[%c0_19, %c0_20, %c0_21], %51 {strides = array<i32>} : memref<1x8x128xf32, #tpu.memory_space<vmem>>, vector<1x8x128xf32>,
    } else {
    }
    %c0_12 = arith.constant 0 : index
    %c0_13 = arith.constant 0 : index
    %c0_14 = arith.constant 0 : index
    %45 = vector.load %arg5[%c0_12, %c0_13, %c0_14] : memref<1x8x128xf32, #tpu.memory_space<vmem>>, vector<1x8x128xf32>
    %46 = vector.shape_cast %45 : vector<1x8x128xf32> to vector<8x128xf32>
    %47 = arith.addf %46, %41 : vector<8x128xf32>
    %c0_15 = arith.constant 0 : index
    %c0_16 = arith.constant 0 : index
    %c0_17 = arith.constant 0 : index
    %48 = vector.load %arg5[%c0_15, %c0_16, %c0_17] : memref<1x8x128xf32, #tpu.memory_space<vmem>>, vector<1x8x128xf32>
    %49 = vector.shape_cast %48 : vector<1x8x128xf32> to vector<8x128xf32>
    %50 = vector.shape_cast %47 : vector<8x128xf32> to vector<1x8x128xf32>
    tpu.vector_store %arg5[%c0_15, %c0_16, %c0_17], %50 {strides = array<i32>} : memref<1x8x128xf32, #tpu.memory_space<vmem>>, vector<1x8x128xf32>,
    return
  }
  func.func @transform_0(%arg0: i32, %arg1: i32) -> (i32, i32, i32) {
    %c0_i32 = arith.constant 0 : i32
    %c0_i32_0 = arith.constant 0 : i32
    return %arg0, %arg1, %c0_i32 : i32, i32, i32
  }
  func.func @transform_1(%arg0: i32, %arg1: i32) -> (i32, i32) {
    %c0_i32 = arith.constant 0 : i32
    %c0_i32_0 = arith.constant 0 : i32
    %c0_i32_1 = arith.constant 0 : i32
    return %c0_i32, %c0_i32_0 : i32, i32
  }
  func.func @transform_2(%arg0: i32, %arg1: i32) -> (i32, i32, i32) {
    %c0_i32 = arith.constant 0 : i32
    %c0_i32_0 = arith.constant 0 : i32
    return %arg0, %arg1, %c0_i32 : i32, i32, i32
  }
  func.func @transform_3(%arg0: i32, %arg1: i32) -> (i32, i32, i32) {
    %c0_i32 = arith.constant 0 : i32
    %c0_i32_0 = arith.constant 0 : i32
    %c0_i32_1 = arith.constant 0 : i32
    return %arg0, %c0_i32, %c0_i32_0 : i32, i32, i32
  }
}

</mosaic_0001>

<llo_original>
// kernel: tpu_custom_call.1
$region0: #{tpu_custom_call.1}
  #allocation0 [shape = 'u32[]', space=smem, size = 0x4, offset = 0x4, fixed_abs, tag = 'smem constant byte address 0x4 - core index']
  #allocation1 [shape = 'u32[144,128]{1,0:T(1,128)}', space=vmem, size = 0x12000, scoped, tag = 'internal scratch']
  %s0 = inlined_call_operand.vmem [shape: f32[2,40,3], index: 0, kind: input, shape index: {}]
  %s1 = inlined_call_operand.vmem [shape: f32[3,128], index: 1, kind: input, shape index: {}]
  %s2 = inlined_call_operand.hbm [shape: f32[2,40,128], index: 2, kind: output, shape index: {0}]
  %s3 = inlined_call_operand.hbm [shape: f32[2,8,128], index: 3, kind: output, shape index: {1}]
  %4 = xla_tuple %s2, %s3
  %s5 = sld [smem:[#allocation0]]
  $region53: #{tpu_custom_call.1} parent=0
    _
  %s7 = ssub.s32 1, %s5
  %s8 = scalar_select 0, %s7, %s5
  $region1: #{tpu_custom_call.1} parent=0
    #allocation2 [shape = 'u8[8192]{0}', space=vmem, size = 0x2000, scoped, tag = 'output window, operand 0']
    #allocation3 [shape = 's32[2]{0}', space=sflag, size = 0x8, scoped, tag = 'scoped memory for tpu_custom_call.1']
    #allocation4 [shape = 'u8[8192]{0}', space=vmem, size = 0x2000, scoped, tag = 'output window, operand 1']
    #allocation5 [shape = 's32[2]{0}', space=sflag, size = 0x8, scoped, tag = 'scoped memory for tpu_custom_call.1']
    %9 = vsyncpa [#allocation3], 0
    %s10 = scalar_lea.sflag [#allocation3], 1
    %11 = vsyncpa %s10, 0
    %12 = vsyncpa [#allocation5], 0
    %s13 = scalar_lea.sflag [#allocation5], 1
    %14 = vsyncpa %s13, 0
    loop: start=0, step=1, limit=12
    $region2: #{tpu_custom_call.1} parent=1 // loop_pre_header
      _
    $region3: #{tpu_custom_call.1} parent=1 // loop_header
      %s16 = sphi 0, %s20
      %p17 = scmp.ge.s32.totalorder %s16, 12
      %s23 = sphi 0, %s35
      %s24 = sphi 0, %s31
      %s25 = sphi 0, %s23
      %s26 = sphi 0, %s24
      %s27 = sphi 0, %s25
      %s28 = sphi 0, %s26
      %s40 = sphi 0, %s42
      %s43 = sphi 0, %s40
      %s44 = sphi 0, %s43
      %s60 = sphi 0, %s44
      %s64 = sphi 0, %s64
      %s66 = sphi 0, %s64
      %s67 = sphi 0, %s66
      %s81 = sphi 0, %s67
      %s89 = sphi 0, %s91
      %s92 = sphi 0, %s89
      %s93 = sphi 0, %s92
      %s109 = sphi 0, %s93
      %s115 = sphi 0, %s117
      %s118 = sphi 0, %s115
      %s119 = sphi 0, %s118
      %s135 = sphi 0, %s119
    $region4: #{tpu_custom_call.1} parent=1 // loop_header_branch
      %19 = sbr.rel (%p17) target = $region8
    $region5: #{tpu_custom_call.1} parent=1 // loop_body
      %s21 = ssub.s32 %s16, 1
      %s22 = ssub.s32 %s16, 2
      %s29 = sadd.s32 1, %s24
      %p30 = scmp.ge.s32.totalorder %s29, 5
      %s31 = scalar_select %p30, 0, %s29
      %s32 = sadd.s32 1, %s23
      %s33 = scalar_select %p30, %s32, %s23
      %p34 = scmp.ge.s32.totalorder %s33, 2
      %s35 = scalar_select %p34, 0, %s33
      %s36 = ssub.s32 %s23, %s35
      %s37 = ssub.s32 %s24, %s31
      %s38 = sor.u32 %s36, %s37
      %p39 = scmp.eq.s32.totalorder %s38, 0
      %s41 = sadd.s32 %s40, 1
      %s42 = scalar_select %p39, %s40, %s41
      %p45 = pneg %p39
      %p46 = scmp.eq.s32.totalorder %s16, 9
      %p47 = por %p45, %p46
      %p48 = scmp.ne.s32.totalorder %s40, %s43
      %p49 = scmp.eq.s32.totalorder %s16, 0
      %p50 = por %p48, %p49
      %p51 = scmp.ne.s32.totalorder %s40, %s43
      %p52 = scmp.eq.s32.totalorder %s21, 9
      %p53 = por %p51, %p52
      %p54 = scmp.ne.s32.totalorder %s43, %s44
      %p55 = scmp.eq.s32.totalorder %s21, 0
      %p56 = por %p54, %p55
      %p57 = scmp.ne.s32.totalorder %s43, %s44
      %p58 = scmp.eq.s32.totalorder %s22, 9
      %p59 = por %p57, %p58
      %p61 = scmp.ne.s32.totalorder %s44, %s60
      %p62 = scmp.eq.s32.totalorder %s22, 0
      %p63 = por %p61, %p62
      %s65 = sadd.s32 %s64, 1
      %p68 = scmp.eq.s32.totalorder %s16, 9
      %p69 = scmp.ne.s32.totalorder %s64, %s66
      %p70 = scmp.eq.s32.totalorder %s16, 0
      %p71 = por %p69, %p70
      %p72 = scmp.ne.s32.totalorder %s64, %s66
      %p73 = scmp.eq.s32.totalorder %s21, 9
      %p74 = por %p72, %p73
      %p75 = scmp.ne.s32.totalorder %s66, %s67
      %p76 = scmp.eq.s32.totalorder %s21, 0
      %p77 = por %p75, %p76
      %p78 = scmp.ne.s32.totalorder %s66, %s67
      %p79 = scmp.eq.s32.totalorder %s22, 9
      %p80 = por %p78, %p79
      %p82 = scmp.ne.s32.totalorder %s67, %s81
      %p83 = scmp.eq.s32.totalorder %s22, 0
      %p84 = por %p82, %p83
      %s85 = ssub.s32 %s23, %s35
      %s86 = ssub.s32 %s24, %s31
      %s87 = sor.u32 %s85, %s86
      %p88 = scmp.eq.s32.totalorder %s87, 0
      %s90 = sadd.s32 %s89, 1
      %s91 = scalar_select %p88, %s89, %s90
      %p94 = pneg %p88
      %p95 = scmp.eq.s32.totalorder %s16, 9
      %p96 = por %p94, %p95
      %p97 = scmp.ne.s32.totalorder %s89, %s92
      %p98 = scmp.eq.s32.totalorder %s16, 0
      %p99 = por %p97, %p98
      %p100 = scmp.ne.s32.totalorder %s89, %s92
      %p101 = scmp.eq.s32.totalorder %s21, 9
      %p102 = por %p100, %p101
      %p103 = scmp.ne.s32.totalorder %s92, %s93
      %p104 = scmp.eq.s32.totalorder %s21, 0
      %p105 = por %p103, %p104
      %p106 = scmp.ne.s32.totalorder %s92, %s93
      %p107 = scmp.eq.s32.totalorder %s22, 9
      %p108 = por %p106, %p107
      %p110 = scmp.ne.s32.totalorder %s93, %s109
      %p111 = scmp.eq.s32.totalorder %s22, 0
      %p112 = por %p110, %p111
      %s113 = ssub.s32 %s23, %s35
      %p114 = scmp.eq.s32.totalorder %s113, 0
      %s116 = sadd.s32 %s115, 1
      %s117 = scalar_select %p114, %s115, %s116
      %p120 = pneg %p114
      %p121 = scmp.eq.s32.totalorder %s16, 9
      %p122 = por %p120, %p121
      %p123 = scmp.ne.s32.totalorder %s115, %s118
      %p124 = scmp.eq.s32.totalorder %s16, 0
      %p125 = por %p123, %p124
      %p126 = scmp.ne.s32.totalorder %s115, %s118
      %p127 = scmp.eq.s32.totalorder %s21, 9
      %p128 = por %p126, %p127
      %p129 = scmp.ne.s32.totalorder %s118, %s119
      %p130 = scmp.eq.s32.totalorder %s21, 0
      %p131 = por %p129, %p130
      %p132 = scmp.ne.s32.totalorder %s118, %s119
      %p133 = scmp.eq.s32.totalorder %s22, 9
      %p134 = por %p132, %p133
      %p136 = scmp.ne.s32.totalorder %s119, %s135
      %p137 = scmp.eq.s32.totalorder %s22, 0
      %p138 = por %p136, %p137
      %p139 = scmp.le.s32.totalorder 1, %s16
      %p140 = scmp.lt.s32.totalorder %s16, 11
      %p141 = pnand %p139, %p140
      %p142 = pneg %p141
      // Predicated region
      $region9: #{tpu_custom_call.1} parent=5 // pred_check
        _
      $region10: #{tpu_custom_call.1} parent=5 // pred_check_branch
        %144 = sbr.rel (%p141) target = $region12
      $region11: #{tpu_custom_call.1} parent=5 // pred_region
        %s145 = ssub.s32 %s16, 1
        // Predicated region
        $region13: #{tpu_custom_call.1} parent=11 // pred_check
          %p146 = pneg %p77
        $region14: #{tpu_custom_call.1} parent=11 // pred_check_branch
          %148 = sbr.rel (%p146) target = $region16
        $region15: #{tpu_custom_call.1} parent=11 // pred_region
          _
        $region16: #{tpu_custom_call.1} parent=11 // pred_fallthru
          _
      $region12: #{tpu_custom_call.1} parent=5 // pred_fallthru
        _
      %p149 = scmp.lt.s32.totalorder %s16, 10
      // Predicated region
      $region17: #{tpu_custom_call.1} parent=5 // pred_check
        %p150 = pneg %p149
      $region18: #{tpu_custom_call.1} parent=5 // pred_check_branch
        %152 = sbr.rel (%p150) target = $region20
      $region19: #{tpu_custom_call.1} parent=5 // pred_region
        // Predicated region
        $region21: #{tpu_custom_call.1} parent=19 // pred_check
          %p153 = pneg %p50
        $region22: #{tpu_custom_call.1} parent=19 // pred_check_branch
          %155 = sbr.rel (%p153) target = $region24
        $region23: #{tpu_custom_call.1} parent=19 // pred_region
          %p156 = scmp.lt.s32.totalorder %s23, 1
          %s157 = scalar_select %p156, %s23, 1
          %p158 = scmp.lt.s32.totalorder %s24, 4
          %s159 = scalar_select %p158, %s24, 4
          %s160 = smul.addr %s157, 5
          %s161 = sadd.s32 %s159, %s160
          %s162 = smul.addr %s161, 8
          %s163 = scalar_lea.vmem %s0, %s162
        $region24: #{tpu_custom_call.1} parent=19 // pred_fallthru
          _
      $region20: #{tpu_custom_call.1} parent=5 // pred_fallthru
        _
      %p164 = scmp.le.s32.totalorder 1, %s16
      %p165 = scmp.lt.s32.totalorder %s16, 11
      %p166 = pnand %p164, %p165
      %p167 = pneg %p166
      // Predicated region
      $region25: #{tpu_custom_call.1} parent=5 // pred_check
        _
      $region26: #{tpu_custom_call.1} parent=5 // pred_check_branch
        %169 = sbr.rel (%p166) target = $region28
      $region27: #{tpu_custom_call.1} parent=5 // pred_region
        %s170 = ssub.s32 %s16, 1
        %p171 = scmp.lt.s32.totalorder %s25, 1
        %s172 = scalar_select %p171, %s25, 1
        %p173 = scmp.lt.s32.totalorder %s26, 4
        %s174 = scalar_select %p173, %s26, 4
        %s175 = smul.addr %s172, 5
        %s176 = sadd.s32 %s174, %s175
        %s177 = smul.addr %s176, 8
        %s178 = scalar_lea.vmem %s0, %s177
        %p179 = pneg %p56
        %p180 = pneg %p53
        %p181 = pneg %p77
        %p182 = pneg %p74
        %p183 = pneg %p105
        %p184 = pneg %p102
        %s185 = sand.u32 %s92, 1
        %s186 = scalar_lea.sflag [#allocation3], %s185
        %s187 = sand.u32 %s92, 1
        %s188 = smul.addr %s187, 8
        %s189 = scalar_lea.vmem [#allocation2], %s188
        %p190 = pneg %p131
        %p191 = pneg %p128
        %s192 = sand.u32 %s118, 1
        %s193 = scalar_lea.sflag [#allocation5], %s192
        %s194 = sand.u32 %s118, 1
        %s195 = smul.addr %s194, 8
        %s196 = scalar_lea.vmem [#allocation4], %s195
        %p197 = scmp.lt.s32.totalorder %s25, 1
        %s198 = scalar_select %p197, %s25, 1
        %p199 = scmp.lt.s32.totalorder %s26, 4
        %s200 = scalar_select %p199, %s26, 4
        %s201 = smul.addr %s198, 5
        %s202 = sadd.s32 %s200, %s201
        %s203 = smul.addr %s202, 8
        %s204 = scalar_lea.vmem %s0, %s203
        %v205 = vld [vmem:[%s204] sm:$0xff]
        %v206 = vld [vmem:[%s1] sm:$0x7]
        %208 = vset.pattern.permute.xlu0 0
        %209 = vperm.xlu0 %208, %v205
        %v210 = vpop.permute.xlu0 %209
        %v212 = vlaneseq
        %v213 = vshrl.u32 %v212, 7
        %v214 = vsub.s32 0, %v213
        %v215 = vrot.slane %v206, %v214
        %v216 = vmul.f32 %v210, %v215
        %v217 = vadd.f32 %v216, 0.0
        %218 = vset.pattern.permute.xlu0 1
        %219 = vperm.xlu0 %218, %v205
        %v220 = vpop.permute.xlu0 %219
        %v222 = vlaneseq
        %v223 = vshrl.u32 %v222, 7
        %v224 = vsub.s32 1, %v223
        %v225 = vrot.slane %v206, %v224
        %v226 = vmul.f32 %v220, %v225
        %v227 = vadd.f32 %v217, %v226
        %228 = vset.pattern.permute.xlu0 2
        %229 = vperm.xlu0 %228, %v205
        %v230 = vpop.permute.xlu0 %229
        %v232 = vlaneseq
        %v233 = vshrl.u32 %v232, 7
        %v234 = vsub.s32 2, %v233
        %v235 = vrot.slane %v206, %v234
        %v236 = vmul.f32 %v230, %v235
        %v237 = vadd.f32 %v227, %v236
        %238 = vst [vmem:[%s189] sm:$0xff] %v237
        %s239 = smul.u32 %s26, 8
        %v240 = vlaneseq
        %v241 = vshrl.u32 %v240, 7
        %v242 = vstv %s239
        %v243 = vadd.s32 %v242, %v241
        %vm244 = vcmp.lt.s32.totalorder %v243, 31
        %v245 = vsel %vm244, 1, 0
        %vm246 = vcmp.eq.s32.totalorder %v245, 1
        %v247 = vsel %vm246, %v237, 0.0
        %v248 = vrot.slane %v247, 4
        %v249 = vadd.f32 %v247, %v248
        %v250 = vrot.slane %v249, 2
        %v251 = vadd.f32 %v249, %v250
        %v252 = vrot.slane %v251, 1
        %v253 = vadd.f32 %v251, %v252
        %v254 = vmul.f32 %v247, %v247
        %v255 = vrot.slane %v254, 4
        %v256 = vadd.f32 %v254, %v255
        %v257 = vrot.slane %v256, 2
        %v258 = vadd.f32 %v256, %v257
        %v259 = vrot.slane %v258, 1
        %v260 = vadd.f32 %v258, %v259
        %vm261 = vcmask 1040384
        %v262 = vsel %vm261, %v253, %v260
        %vm263 = vcmask 1041408
        %v264 = vsel %vm263, %v262, 0.0
        %p265 = scmp.eq.s32.totalorder %s26, 0
        // Predicated region
        $region29: #{tpu_custom_call.1} parent=27 // pred_check
          %p266 = pneg %p265
        $region30: #{tpu_custom_call.1} parent=27 // pred_check_branch
          %268 = sbr.rel (%p266) target = $region32
        $region31: #{tpu_custom_call.1} parent=27 // pred_region
          %269 = vst [vmem:[%s196] sm:$0xff] 0.0
        $region32: #{tpu_custom_call.1} parent=27 // pred_fallthru
          _
        %v270 = vld [vmem:[%s196] sm:$0xff]
        %v271 = vadd.f32 %v270, %v264
        %272 = vst [vmem:[%s196] sm:$0xff] %v271
        %s273 = sand.u32 %s92, 1
        %s274 = scalar_lea.sflag [#allocation3], %s273
        %s275 = sand.u32 %s92, 1
        %s276 = smul.addr %s275, 8
        %s277 = scalar_lea.vmem [#allocation2], %s276
        %s278 = sand.u32 %s118, 1
        %s279 = scalar_lea.sflag [#allocation5], %s278
        %s280 = sand.u32 %s118, 1
        %s281 = smul.addr %s280, 8
        %s282 = scalar_lea.vmem [#allocation4], %s281
        // Predicated region
        $region33: #{tpu_custom_call.1} parent=27 // pred_check
          %p283 = pneg %p102
        $region34: #{tpu_custom_call.1} parent=27 // pred_check_branch
          %285 = sbr.rel (%p283) target = $region36
        $region35: #{tpu_custom_call.1} parent=27 // pred_region
          %s287 = ssub.s32 128, 128
          %288 = vsyncadd %s274, %s287
          %s289 = smul.addr %s25, 5
          %s290 = sadd.s32 %s26, %s289
          %s291 = smul.addr %s290, 128
          %s292 = scalar_lea.hbm %s2, %s291
          %s294 = sshll.u32 %s277, 4
          %s295 = int_to_ptr.vmem [resolvable:$true] %s294
          %297 = dma.vmem_to_hbm [thread:$0]  %s295, 128, %s292, %s274
        $region36: #{tpu_custom_call.1} parent=27 // pred_fallthru
          _
        // Predicated region
        $region37: #{tpu_custom_call.1} parent=27 // pred_check
          %p298 = pneg %p128
        $region38: #{tpu_custom_call.1} parent=27 // pred_check_branch
          %300 = sbr.rel (%p298) target = $region40
        $region39: #{tpu_custom_call.1} parent=27 // pred_region
          %s302 = ssub.s32 128, 128
          %303 = vsyncadd %s279, %s302
          %s304 = smul.addr %s25, 128
          %s305 = scalar_lea.hbm %s3, %s304
          %s307 = sshll.u32 %s282, 4
          %s308 = int_to_ptr.vmem [resolvable:$true] %s307
          %310 = dma.vmem_to_hbm [thread:$0]  %s308, 128, %s305, %s279
        $region40: #{tpu_custom_call.1} parent=27 // pred_fallthru
          _
      $region28: #{tpu_custom_call.1} parent=5 // pred_fallthru
        _
      %p311 = scmp.le.s32.totalorder 2, %s16
      // Predicated region
      $region41: #{tpu_custom_call.1} parent=5 // pred_check
        %p312 = pneg %p311
      $region42: #{tpu_custom_call.1} parent=5 // pred_check_branch
        %314 = sbr.rel (%p312) target = $region44
      $region43: #{tpu_custom_call.1} parent=5 // pred_region
        %s315 = ssub.s32 %s16, 2
        // Predicated region
        $region45: #{tpu_custom_call.1} parent=43 // pred_check
          %p316 = pneg %p108
        $region46: #{tpu_custom_call.1} parent=43 // pred_check_branch
          %318 = sbr.rel (%p316) target = $region48
        $region47: #{tpu_custom_call.1} parent=43 // pred_region
          %s319 = sand.u32 %s93, 1
          %s320 = scalar_lea.sflag [#allocation3], %s319
          %s321 = sand.u32 %s93, 1
          %s322 = smul.addr %s321, 8
          %s323 = scalar_lea.vmem [#allocation2], %s322
          %324 = dma.done %s320, 128
        $region48: #{tpu_custom_call.1} parent=43 // pred_fallthru
          _
        // Predicated region
        $region49: #{tpu_custom_call.1} parent=43 // pred_check
          %p325 = pneg %p134
        $region50: #{tpu_custom_call.1} parent=43 // pred_check_branch
          %327 = sbr.rel (%p325) target = $region52
        $region51: #{tpu_custom_call.1} parent=43 // pred_region
          %s328 = sand.u32 %s119, 1
          %s329 = scalar_lea.sflag [#allocation5], %s328
          %s330 = sand.u32 %s119, 1
          %s331 = smul.addr %s330, 8
          %s332 = scalar_lea.vmem [#allocation4], %s331
          %333 = dma.done %s329, 128
        $region52: #{tpu_custom_call.1} parent=43 // pred_fallthru
          _
      $region44: #{tpu_custom_call.1} parent=5 // pred_fallthru
        _
    $region6: #{tpu_custom_call.1} parent=1 // loop_footer
      %s20 = sadd.s32 1, %s16
    $region7: #{tpu_custom_call.1} parent=1 // loop_footer_branch
      %15 = sbr.rel target = $region3
    $region8: #{tpu_custom_call.1} parent=1 // loop_exit
      _
    %334 = vsyncpa [#allocation3], 1
    %s335 = scalar_lea.sflag [#allocation3], 1
    %336 = vsyncpa %s335, 1
    %337 = vsyncpa [#allocation5], 1
    %s338 = scalar_lea.sflag [#allocation5], 1
    %339 = vsyncpa %s338, 1

</llo_original>
